<compile_context>
chip_gen: v7x
topology: tpu7x:2x2x1
jax: 0.10.0
libtpu: 0.0.40
codegen_flags: <defaults>
</compile_context>

<pallas_src>
import functools

import numpy as np
import jax
import jax.numpy as jnp
from jax.experimental import pallas as pl
from jax.experimental.pallas import tpu as pltpu

C_POW = 0.3   # compression exponent (self.c)
L_MIX = 0.3   # phasor mix (self.l)


def _round_up(x, m):
    return ((x + m - 1) // m) * m


def _cdiv(a, b):
    return -(-a // b)


def _loss_kernel(x_ref, out_ref, *, c_pow, l_mix):
    """x_ref block: (4, tm, T) = [enh_re, enh_im, cln_re, cln_im] row tiles.

    Per step: compute the per-element mixed loss term, reduce the block to a
    scalar, and accumulate into the (1,1,1) output block (resident across the
    reduction axis).  Zero rows (padding) contribute exactly 0.
    """
    k = pl.program_id(1)

    @pl.when(k == 0)
    def _():
        out_ref[...] = jnp.zeros_like(out_ref)

    er = x_ref[0]
    ei = x_ref[1]
    cr = x_ref[2]
    ci = x_ref[3]

    # |x|^2 clamped at 1e-16  <=>  |x| clamped at 1e-8 (torch.max(abs, 1e-8))
    e2 = jnp.maximum(er * er + ei * ei, 1e-16)
    c2 = jnp.maximum(cr * cr + ci * ci, 1e-16)
    le = jnp.log(e2)
    lc = jnp.log(c2)

    e_c = jnp.exp((0.5 * c_pow) * le)            # |e|^c
    c_c = jnp.exp((0.5 * c_pow) * lc)            # |c|^c
    e_s = jnp.exp((0.5 * (c_pow - 1.0)) * le)    # |e|^(c-1)
    c_s = jnp.exp((0.5 * (c_pow - 1.0)) * lc)    # |c|^(c-1)

    d = c_c - e_c                                # compressed-magnitude diff
    dr = c_s * cr - e_s * er                     # phasor diff, real
    di = c_s * ci - e_s * ei                     # phasor diff, imag
    term = (1.0 - l_mix) * (d * d) + l_mix * (dr * dr + di * di)

    # Per-step scalar partial; cross-lane reduce uses the idle XLU slot.
    out_ref[...] += jnp.sum(term, keepdims=True).reshape(1, 1, 1)


def complex_compressed_mse_loss(enhanced, clean, w=None, beta=0.0,
                                c=C_POW, l=L_MIX):
    assert enhanced.shape == clean.shape
    t = int(enhanced.shape[-1])
    total_n = int(np.prod(enhanced.shape))
    rows = total_n // t

    # ---- tiling: ~2 MiB per-buffer input block, rebalanced to divide rows --
    tm_cap = max(8, ((2 * 1024 * 1024) // (4 * 4 * t)) // 8 * 8)   # 4 planes * 4 B
    tm_cap = min(tm_cap, 2048)
    nblk = _cdiv(rows, tm_cap)
    if nblk % 2 == 1 and rows >= 512:
        nblk += 1                                 # let v7x's two TCs both work
    tm = _round_up(_cdiv(rows, nblk), 8)          # balanced tile; pad < 8*nblk rows
    rows_pad = nblk * tm
    pad = rows_pad - rows

    n_par = 2 if (nblk >= 2 and nblk % 2 == 0) else 1
    steps = nblk // n_par

    # One staging copy (complex64 -> 4 f32 planes); pad is fused into the same
    # staging expression (padded rows contribute exactly 0 to the loss).
    def _plane(z):
        z = z.reshape(rows, t).astype(jnp.float32)
        if pad:
            z = jnp.pad(z, ((0, pad), (0, 0)))
        return z

    x = jnp.stack([_plane(jnp.real(enhanced)), _plane(jnp.imag(enhanced)),
                   _plane(jnp.real(clean)), _plane(jnp.imag(clean))], axis=0)

    block_bytes = 4 * tm * t * 4
    vmem_limit = int(min(max(4 * block_bytes + (4 << 20), 16 << 20), 48 << 20))

    out = pl.pallas_call(
        functools.partial(_loss_kernel, c_pow=float(c), l_mix=float(l)),
        out_shape=jax.ShapeDtypeStruct((n_par, 1, 1), jnp.float32),
        grid=(n_par, steps),
        in_specs=[pl.BlockSpec((4, tm, t), lambda i, k: (0, i * steps + k, 0))],
        out_specs=pl.BlockSpec((1, 1, 1), lambda i, k: (i, 0, 0)),
        compiler_params=pltpu.CompilerParams(
            dimension_semantics=("parallel", "arbitrary"),
            vmem_limit_bytes=vmem_limit),
    )(x)
    loss = jnp.sum(out) * (1.0 / float(total_n))

    if w is None:
        return loss, None

    # Filter regularizer in plain XLA (per review: a separate pallas_call is
    # launch-overhead dominated; a trace-time DFT matrix doesn't scale in M).
    wf = jnp.fft.fft(w.astype(jnp.float32), axis=1)
    w_hat = jnp.sum(jnp.real(wf) ** 2 + jnp.imag(wf) ** 2, axis=0)
    # TODO(synk): like the PyTorch reference, reg blows up if min(w_hat) ~ 0.
    reg = jnp.max(w_hat) / jnp.min(w_hat) - 1.0
    loss_ = loss + beta * reg
    return loss, loss_


if __name__ == "__main__":
    key = jax.random.PRNGKey(0)
    k1, k2, k3, k4, k5 = jax.random.split(key, 5)

    B, F, T = 2, 64, 128          # small complex spectrogram (batch, freq, frames)
    enh = (jax.random.normal(k1, (B, F, T)) +
           1j * jax.random.normal(k2, (B, F, T))).astype(jnp.complex64)
    cln = (jax.random.normal(k3, (B, F, T)) +
           1j * jax.random.normal(k4, (B, F, T))).astype(jnp.complex64)
    w = jax.random.normal(k5, (8, 128), dtype=jnp.float32)   # (num_filters, filter_len)
    beta = 0.5

    loss, loss_ = complex_compressed_mse_loss(enh, cln, w=w, beta=beta)
    loss_nw, none_val = complex_compressed_mse_loss(enh, cln, w=None, beta=beta)

    # Ragged row count + non-128 frame dim exercises the fused-pad path.
    B2, F2, T2 = 3, 50, 96
    enh2 = (jax.random.normal(k1, (B2, F2, T2)) +
            1j * jax.random.normal(k2, (B2, F2, T2))).astype(jnp.complex64)
    cln2 = (jax.random.normal(k3, (B2, F2, T2)) +
            1j * jax.random.normal(k4, (B2, F2, T2))).astype(jnp.complex64)
    loss2, none2 = complex_compressed_mse_loss(enh2, cln2, w=None, beta=beta)

    jax.block_until_ready((loss, loss_, loss_nw, loss2))

    # pure-JAX reference for sanity
    def ref_loss(e, c_, c=C_POW, l=L_MIX):
        em = jnp.maximum(jnp.abs(e), 1e-8)
        cm = jnp.maximum(jnp.abs(c_), 1e-8)
        mag = jnp.mean((cm ** c - em ** c) ** 2)
        ph = jnp.mean(jnp.abs(cm ** c * (c_ / cm) - em ** c * (e / em)) ** 2)
        return (1 - l) * mag + l * ph

    r0 = ref_loss(enh, cln)
    w_hat = jnp.sum(jnp.abs(jnp.fft.fft(w, axis=1)) ** 2, axis=0)
    r1 = r0 + beta * (jnp.max(w_hat) / jnp.min(w_hat) - 1.0)
    r2 = ref_loss(enh2, cln2)

    assert np.allclose(np.asarray(loss), np.asarray(r0), rtol=5e-3, atol=1e-5), (loss, r0)
    assert np.allclose(np.asarray(loss_), np.asarray(r1), rtol=5e-3, atol=1e-5), (loss_, r1)
    assert np.allclose(np.asarray(loss_nw), np.asarray(r0), rtol=5e-3, atol=1e-5), (loss_nw, r0)
    assert np.allclose(np.asarray(loss2), np.asarray(r2), rtol=5e-3, atol=1e-5), (loss2, r2)
    assert none_val is None
    assert none2 is None

    print("KERNEL_OK")
</pallas_src>

<mosaic_0001>
module attributes {stable_mosaic.version = 11 : i64} {
  func.func @_loss_kernel(%arg0: i32, %arg1: i32, %arg2: memref<4x128x128xf32, #tpu.memory_space<vmem>>, %arg3: memref<1x1x1xf32, #tpu.memory_space<vmem>>) attributes {dimension_semantics = [#tpu.dimension_semantics<parallel>, #tpu.dimension_semantics<arbitrary>], iteration_bounds = array<i64: 1, 1>, scalar_prefetch = 0 : i64, scratch_operands = 0 : i64, tpu.core_type = #tpu.core_type<tc>, window_params = [{transform_indices = @transform_0, window_bounds = array<i64: 4, 128, 128>}, {transform_indices = @transform_1, window_bounds = array<i64: 1, 1, 1>}]} {
    %c0_i32 = arith.constant 0 : i32
    %0 = arith.cmpi eq, %arg1, %c0_i32 : i32
    %1 = arith.extui %0 : i1 to i32
    %c0_i32_0 = arith.constant 0 : i32
    %2 = arith.cmpi ne, %1, %c0_i32_0 : i32
    scf.if %2 {
      %cst_23 = arith.constant 0.000000e+00 : f32
      %60 = vector.broadcast %cst_23 : f32 to vector<1x1x1xf32>
      %c0_24 = arith.constant 0 : index
      %c0_25 = arith.constant 0 : index
      %c0_26 = arith.constant 0 : index
      %61 = vector.load %arg3[%c0_24, %c0_25, %c0_26] : memref<1x1x1xf32, #tpu.memory_space<vmem>>, vector<1x1x1xf32>
      tpu.vector_store %arg3[%c0_24, %c0_25, %c0_26], %60 {strides = array<i32>} : memref<1x1x1xf32, #tpu.memory_space<vmem>>, vector<1x1x1xf32>,
    } else {
    }
    %c0 = arith.constant 0 : index
    %c0_1 = arith.constant 0 : index
    %c0_2 = arith.constant 0 : index
    %3 = vector.load %arg2[%c0, %c0_1, %c0_2] : memref<4x128x128xf32, #tpu.memory_space<vmem>>, vector<1x128x128xf32>
    %4 = vector.shape_cast %3 : vector<1x128x128xf32> to vector<128x128xf32>
    %c1 = arith.constant 1 : index
    %c0_3 = arith.constant 0 : index
    %c0_4 = arith.constant 0 : index
    %5 = vector.load %arg2[%c1, %c0_3, %c0_4] : memref<4x128x128xf32, #tpu.memory_space<vmem>>, vector<1x128x128xf32>
    %6 = vector.shape_cast %5 : vector<1x128x128xf32> to vector<128x128xf32>
    %c2 = arith.constant 2 : index
    %c0_5 = arith.constant 0 : index
    %c0_6 = arith.constant 0 : index
    %7 = vector.load %arg2[%c2, %c0_5, %c0_6] : memref<4x128x128xf32, #tpu.memory_space<vmem>>, vector<1x128x128xf32>
    %8 = vector.shape_cast %7 : vector<1x128x128xf32> to vector<128x128xf32>
    %c3 = arith.constant 3 : index
    %c0_7 = arith.constant 0 : index
    %c0_8 = arith.constant 0 : index
    %9 = vector.load %arg2[%c3, %c0_7, %c0_8] : memref<4x128x128xf32, #tpu.memory_space<vmem>>, vector<1x128x128xf32>
    %10 = vector.shape_cast %9 : vector<1x128x128xf32> to vector<128x128xf32>
    %11 = arith.mulf %4, %4 : vector<128x128xf32>
    %12 = arith.mulf %6, %6 : vector<128x128xf32>
    %13 = arith.addf %11, %12 : vector<128x128xf32>
    %cst = arith.constant 1.000000e-16 : f32
    %14 = vector.broadcast %cst : f32 to vector<128x128xf32>
    %15 = arith.maximumf %13, %14 : vector<128x128xf32>
    %16 = arith.mulf %8, %8 : vector<128x128xf32>
    %17 = arith.mulf %10, %10 : vector<128x128xf32>
    %18 = arith.addf %16, %17 : vector<128x128xf32>
    %cst_9 = arith.constant 1.000000e-16 : f32
    %19 = vector.broadcast %cst_9 : f32 to vector<128x128xf32>
    %20 = arith.maximumf %18, %19 : vector<128x128xf32>
    %21 = math.log %15 : vector<128x128xf32>
    %22 = math.log %20 : vector<128x128xf32>
    %cst_10 = arith.constant 1.500000e-01 : f32
    %23 = vector.broadcast %cst_10 : f32 to vector<128x128xf32>
    %24 = arith.mulf %23, %21 : vector<128x128xf32>
    %25 = math.exp %24 : vector<128x128xf32>
    %cst_11 = arith.constant 1.500000e-01 : f32
    %26 = vector.broadcast %cst_11 : f32 to vector<128x128xf32>
    %27 = arith.mulf %26, %22 : vector<128x128xf32>
    %28 = math.exp %27 : vector<128x128xf32>
    %cst_12 = arith.constant -3.500000e-01 : f32
    %29 = vector.broadcast %cst_12 : f32 to vector<128x128xf32>
    %30 = arith.mulf %29, %21 : vector<128x128xf32>
    %31 = math.exp %30 : vector<128x128xf32>
    %cst_13 = arith.constant -3.500000e-01 : f32
    %32 = vector.broadcast %cst_13 : f32 to vector<128x128xf32>
    %33 = arith.mulf %32, %22 : vector<128x128xf32>
    %34 = math.exp %33 : vector<128x128xf32>
    %35 = arith.subf %28, %25 : vector<128x128xf32>
    %36 = arith.mulf %34, %8 : vector<128x128xf32>
    %37 = arith.mulf %31, %4 : vector<128x128xf32>
    %38 = arith.subf %36, %37 : vector<128x128xf32>
    %39 = arith.mulf %34, %10 : vector<128x128xf32>
    %40 = arith.mulf %31, %6 : vector<128x128xf32>
    %41 = arith.subf %39, %40 : vector<128x128xf32>
    %42 = arith.mulf %35, %35 : vector<128x128xf32>
    %cst_14 = arith.constant 0.699999988 : f32
    %43 = vector.broadcast %cst_14 : f32 to vector<128x128xf32>
    %44 = arith.mulf %43, %42 : vector<128x128xf32>
    %45 = arith.mulf %38, %38 : vector<128x128xf32>
    %46 = arith.mulf %41, %41 : vector<128x128xf32>
    %47 = arith.addf %45, %46 : vector<128x128xf32>
    %cst_15 = arith.constant 3.000000e-01 : f32
    %48 = vector.broadcast %cst_15 : f32 to vector<128x128xf32>
    %49 = arith.mulf %48, %47 : vector<128x128xf32>
    %50 = arith.addf %44, %49 : vector<128x128xf32>
    %c0_16 = arith.constant 0 : index
    %c0_17 = arith.constant 0 : index
    %c0_18 = arith.constant 0 : index
    %51 = vector.load %arg3[%c0_16, %c0_17, %c0_18] : memref<1x1x1xf32, #tpu.memory_space<vmem>>, vector<1x1x1xf32>
    %52 = vector.shape_cast %50 : vector<128x128xf32> to vector<1x128x128xf32>
    %cst_19 = arith.constant dense<0.000000e+00> : vector<1xf32>
    %53 = vector.multi_reduction <add>, %52, %cst_19 [1, 2] : vector<1x128x128xf32> to vector<1xf32>
    %54 = vector.shape_cast %53 : vector<1xf32> to vector<1x1x1xf32>
    %55 = vector.extract %54[0, 0, 0] : f32 from vector<1x1x1xf32>
    %56 = vector.broadcast %55 : f32 to vector<1x1xf32>
    %57 = vector.shape_cast %56 : vector<1x1xf32> to vector<1x1x1xf32>
    %58 = arith.addf %51, %57 : vector<1x1x1xf32>
    %c0_20 = arith.constant 0 : index
    %c0_21 = arith.constant 0 : index
    %c0_22 = arith.constant 0 : index
    %59 = vector.load %arg3[%c0_20, %c0_21, %c0_22] : memref<1x1x1xf32, #tpu.memory_space<vmem>>, vector<1x1x1xf32>
    tpu.vector_store %arg3[%c0_20, %c0_21, %c0_22], %58 {strides = array<i32>} : memref<1x1x1xf32, #tpu.memory_space<vmem>>, vector<1x1x1xf32>,
    return
  }
  func.func @transform_0(%arg0: i32, %arg1: i32) -> (i32, i32, i32) {
    %c1_i32 = arith.constant 1 : i32
    %0 = arith.muli %arg0, %c1_i32 : i32
    %1 = arith.addi %0, %arg1 : i32
    %c0_i32 = arith.constant 0 : i32
    %c0_i32_0 = arith.constant 0 : i32
    %c0_i32_1 = arith.constant 0 : i32
    return %c0_i32, %1, %c0_i32_0 : i32, i32, i32
  }
  func.func @transform_1(%arg0: i32, %arg1: i32) -> (i32, i32, i32) {
    %c0_i32 = arith.constant 0 : i32
    %c0_i32_0 = arith.constant 0 : i32
    %c0_i32_1 = arith.constant 0 : i32
    return %arg0, %c0_i32, %c0_i32_0 : i32, i32, i32
  }
}

</mosaic_0001>

<llo_original>
// kernel: tpu_custom_call.1
$region0: #{tpu_custom_call.1}
  #allocation0 [shape = 'u32[]', space=smem, size = 0x4, offset = 0x4, fixed_abs, tag = 'smem constant byte address 0x4 - core index']
  #allocation1 [shape = 'u32[144,128]{1,0:T(1,128)}', space=vmem, size = 0x12000, scoped, tag = 'internal scratch']
  %s0 = inlined_call_operand.hbm [shape: f32[4,128,128], index: 0, kind: input, shape index: {}]
  %s1 = inlined_call_operand.hbm [shape: f32[1,1,1], index: 1, kind: output, shape index: {}]
  %s2 = sld [smem:[#allocation0]]
  $region22: #{tpu_custom_call.1} parent=0
    _
  %s4 = ssub.s32 1, %s2
  %s5 = scalar_select 0, %s4, %s2
  $region1: #{tpu_custom_call.1} parent=0
    #allocation2 [shape = 'u8[262144]{0}', space=vmem, size = 0x40000, scoped, tag = 'input window, operand 0, single buffered']
    #allocation3 [shape = 's32[1]{0}', space=sflag, size = 0x4, scoped, tag = 'scoped memory for tpu_custom_call.1']
    #allocation4 [shape = 's32[1]{0}', space=sflag, size = 0x4, scoped, tag = 'scoped memory for tpu_custom_call.1']
    #allocation5 [shape = 'u8[512]{0}', space=vmem, size = 0x400, scoped, tag = 'output window, operand 0, single buffered']
    %6 = vsyncpa [#allocation3], 0
    %7 = vsyncpa [#allocation4], 0
    // Predicated region
    $region2: #{tpu_custom_call.1} parent=1 // pred_check
      _
    $region3: #{tpu_custom_call.1} parent=1 // pred_check_branch
      %9 = sbr.rel (0) target = $region5
    $region4: #{tpu_custom_call.1} parent=1 // pred_region
      %s10 = sadd.s32 0, 0
      %s11 = smul.u32 16, %s10
      %s13 = ssub.s32 8192, 8192
      %14 = vsyncadd [#allocation3], %s13
      %s15 = smul.addr %s11, 128
      %s16 = scalar_lea.hbm %s0, %s15
      %s17 = sshll.u32 [#allocation2], 4
      %s18 = int_to_ptr.vmem [resolvable:$true] %s17
      %23 = dma.hbm_to_vmem [thread:$0]  %s16, 8192, %s18, [#allocation3], 128, 128, 8
    $region5: #{tpu_custom_call.1} parent=1 // pred_fallthru
      _
    // Predicated region
    $region6: #{tpu_custom_call.1} parent=1 // pred_check
      _
    $region7: #{tpu_custom_call.1} parent=1 // pred_check_branch
      %25 = sbr.rel (0) target = $region9
    $region8: #{tpu_custom_call.1} parent=1 // pred_region
      %26 = dma.done [#allocation3], 8192
    $region9: #{tpu_custom_call.1} parent=1 // pred_fallthru
      _
    %s27 = sadd.s32 0, 0
    %s28 = smul.u32 16, %s27
    %p29 = scmp.eq.s32.totalorder 0, 0
    // Predicated region
    $region10: #{tpu_custom_call.1} parent=1 // pred_check
      %p30 = pneg %p29
    $region11: #{tpu_custom_call.1} parent=1 // pred_check_branch
      %32 = sbr.rel (%p30) target = $region13
    $region12: #{tpu_custom_call.1} parent=1 // pred_region
      %vm33 = vcmask 0
      %34 = vst.msk [vmem:[#allocation5] sm:$0x1] %vm33, 0.0
    $region13: #{tpu_custom_call.1} parent=1 // pred_fallthru
      _
    %v35 = vld [vmem:[#allocation2] sm:$0xff]
    %v36 = vld [vmem:[#allocation2 + $0x8] sm:$0xff]
    %v37 = vld [vmem:[#allocation2 + $0x10] sm:$0xff]
    %v38 = vld [vmem:[#allocation2 + $0x18] sm:$0xff]
    %v39 = vld [vmem:[#allocation2 + $0x20] sm:$0xff]
    %v40 = vld [vmem:[#allocation2 + $0x28] sm:$0xff]
    %v41 = vld [vmem:[#allocation2 + $0x30] sm:$0xff]
    %v42 = vld [vmem:[#allocation2 + $0x38] sm:$0xff]
    %v43 = vld [vmem:[#allocation2 + $0x40] sm:$0xff]
    %v44 = vld [vmem:[#allocation2 + $0x48] sm:$0xff]
    %v45 = vld [vmem:[#allocation2 + $0x50] sm:$0xff]
    %v46 = vld [vmem:[#allocation2 + $0x58] sm:$0xff]
    %v47 = vld [vmem:[#allocation2 + $0x60] sm:$0xff]
    %v48 = vld [vmem:[#allocation2 + $0x68] sm:$0xff]
    %v49 = vld [vmem:[#allocation2 + $0x70] sm:$0xff]
    %v50 = vld [vmem:[#allocation2 + $0x78] sm:$0xff]
    %s51 = scalar_lea.vmem [#allocation2], 128
    %v52 = vld [vmem:[%s51] sm:$0xff]
    %v53 = vld [vmem:[%s51 + $0x8] sm:$0xff]
    %v54 = vld [vmem:[%s51 + $0x10] sm:$0xff]
    %v55 = vld [vmem:[%s51 + $0x18] sm:$0xff]
    %v56 = vld [vmem:[%s51 + $0x20] sm:$0xff]
    %v57 = vld [vmem:[%s51 + $0x28] sm:$0xff]
    %v58 = vld [vmem:[%s51 + $0x30] sm:$0xff]
    %v59 = vld [vmem:[%s51 + $0x38] sm:$0xff]
    %v60 = vld [vmem:[%s51 + $0x40] sm:$0xff]
    %v61 = vld [vmem:[%s51 + $0x48] sm:$0xff]
    %v62 = vld [vmem:[%s51 + $0x50] sm:$0xff]
    %v63 = vld [vmem:[%s51 + $0x58] sm:$0xff]
    %v64 = vld [vmem:[%s51 + $0x60] sm:$0xff]
    %v65 = vld [vmem:[%s51 + $0x68] sm:$0xff]
    %v66 = vld [vmem:[%s51 + $0x70] sm:$0xff]
    %v67 = vld [vmem:[%s51 + $0x78] sm:$0xff]
    %s68 = scalar_lea.vmem [#allocation2], 256
    %v69 = vld [vmem:[%s68] sm:$0xff]
    %v70 = vld [vmem:[%s68 + $0x8] sm:$0xff]
    %v71 = vld [vmem:[%s68 + $0x10] sm:$0xff]
    %v72 = vld [vmem:[%s68 + $0x18] sm:$0xff]
    %v73 = vld [vmem:[%s68 + $0x20] sm:$0xff]
    %v74 = vld [vmem:[%s68 + $0x28] sm:$0xff]
    %v75 = vld [vmem:[%s68 + $0x30] sm:$0xff]
    %v76 = vld [vmem:[%s68 + $0x38] sm:$0xff]
    %v77 = vld [vmem:[%s68 + $0x40] sm:$0xff]
    %v78 = vld [vmem:[%s68 + $0x48] sm:$0xff]
    %v79 = vld [vmem:[%s68 + $0x50] sm:$0xff]
    %v80 = vld [vmem:[%s68 + $0x58] sm:$0xff]
    %v81 = vld [vmem:[%s68 + $0x60] sm:$0xff]
    %v82 = vld [vmem:[%s68 + $0x68] sm:$0xff]
    %v83 = vld [vmem:[%s68 + $0x70] sm:$0xff]
    %v84 = vld [vmem:[%s68 + $0x78] sm:$0xff]
    %s85 = scalar_lea.vmem [#allocation2], 384
    %v86 = vld [vmem:[%s85] sm:$0xff]
    %v87 = vld [vmem:[%s85 + $0x8] sm:$0xff]
    %v88 = vld [vmem:[%s85 + $0x10] sm:$0xff]
    %v89 = vld [vmem:[%s85 + $0x18] sm:$0xff]
    %v90 = vld [vmem:[%s85 + $0x20] sm:$0xff]
    %v91 = vld [vmem:[%s85 + $0x28] sm:$0xff]
    %v92 = vld [vmem:[%s85 + $0x30] sm:$0xff]
    %v93 = vld [vmem:[%s85 + $0x38] sm:$0xff]
    %v94 = vld [vmem:[%s85 + $0x40] sm:$0xff]
    %v95 = vld [vmem:[%s85 + $0x48] sm:$0xff]
    %v96 = vld [vmem:[%s85 + $0x50] sm:$0xff]
    %v97 = vld [vmem:[%s85 + $0x58] sm:$0xff]
    %v98 = vld [vmem:[%s85 + $0x60] sm:$0xff]
    %v99 = vld [vmem:[%s85 + $0x68] sm:$0xff]
    %v100 = vld [vmem:[%s85 + $0x70] sm:$0xff]
    %v101 = vld [vmem:[%s85 + $0x78] sm:$0xff]
    %v102 = vmul.f32 %v35, %v35
    %v103 = vmul.f32 %v36, %v36
    %v104 = vmul.f32 %v37, %v37
    %v105 = vmul.f32 %v38, %v38
    %v106 = vmul.f32 %v39, %v39
    %v107 = vmul.f32 %v40, %v40
    %v108 = vmul.f32 %v41, %v41
    %v109 = vmul.f32 %v42, %v42
    %v110 = vmul.f32 %v43, %v43
    %v111 = vmul.f32 %v44, %v44
    %v112 = vmul.f32 %v45, %v45
    %v113 = vmul.f32 %v46, %v46
    %v114 = vmul.f32 %v47, %v47
    %v115 = vmul.f32 %v48, %v48
    %v116 = vmul.f32 %v49, %v49
    %v117 = vmul.f32 %v50, %v50
    %v118 = vmul.f32 %v52, %v52
    %v119 = vmul.f32 %v53, %v53
    %v120 = vmul.f32 %v54, %v54
    %v121 = vmul.f32 %v55, %v55
    %v122 = vmul.f32 %v56, %v56
    %v123 = vmul.f32 %v57, %v57
    %v124 = vmul.f32 %v58, %v58
    %v125 = vmul.f32 %v59, %v59
    %v126 = vmul.f32 %v60, %v60
    %v127 = vmul.f32 %v61, %v61
    %v128 = vmul.f32 %v62, %v62
    %v129 = vmul.f32 %v63, %v63
    %v130 = vmul.f32 %v64, %v64
    %v131 = vmul.f32 %v65, %v65
    %v132 = vmul.f32 %v66, %v66
    %v133 = vmul.f32 %v67, %v67
    %v134 = vadd.f32 %v102, %v118
    %v135 = vadd.f32 %v103, %v119
    %v136 = vadd.f32 %v104, %v120
    %v137 = vadd.f32 %v105, %v121
    %v138 = vadd.f32 %v106, %v122
    %v139 = vadd.f32 %v107, %v123
    %v140 = vadd.f32 %v108, %v124
    %v141 = vadd.f32 %v109, %v125
    %v142 = vadd.f32 %v110, %v126
    %v143 = vadd.f32 %v111, %v127
    %v144 = vadd.f32 %v112, %v128
    %v145 = vadd.f32 %v113, %v129
    %v146 = vadd.f32 %v114, %v130
    %v147 = vadd.f32 %v115, %v131
    %v148 = vadd.f32 %v116, %v132
    %v149 = vadd.f32 %v117, %v133
    %v150 = vmax.f32 %v134, 1e-16
    %v151 = vmax.f32 %v135, 1e-16
    %v152 = vmax.f32 %v136, 1e-16
    %v153 = vmax.f32 %v137, 1e-16
    %v154 = vmax.f32 %v138, 1e-16
    %v155 = vmax.f32 %v139, 1e-16
    %v156 = vmax.f32 %v140, 1e-16
    %v157 = vmax.f32 %v141, 1e-16
    %v158 = vmax.f32 %v142, 1e-16
    %v159 = vmax.f32 %v143, 1e-16
    %v160 = vmax.f32 %v144, 1e-16
    %v161 = vmax.f32 %v145, 1e-16
    %v162 = vmax.f32 %v146, 1e-16
    %v163 = vmax.f32 %v147, 1e-16
    %v164 = vmax.f32 %v148, 1e-16
    %v165 = vmax.f32 %v149, 1e-16
    %v166 = vmul.f32 %v69, %v69
    %v167 = vmul.f32 %v70, %v70
    %v168 = vmul.f32 %v71, %v71
    %v169 = vmul.f32 %v72, %v72
    %v170 = vmul.f32 %v73, %v73
    %v171 = vmul.f32 %v74, %v74
    %v172 = vmul.f32 %v75, %v75
    %v173 = vmul.f32 %v76, %v76
    %v174 = vmul.f32 %v77, %v77
    %v175 = vmul.f32 %v78, %v78
    %v176 = vmul.f32 %v79, %v79
    %v177 = vmul.f32 %v80, %v80
    %v178 = vmul.f32 %v81, %v81
    %v179 = vmul.f32 %v82, %v82
    %v180 = vmul.f32 %v83, %v83
    %v181 = vmul.f32 %v84, %v84
    %v182 = vmul.f32 %v86, %v86
    %v183 = vmul.f32 %v87, %v87
    %v184 = vmul.f32 %v88, %v88
    %v185 = vmul.f32 %v89, %v89
    %v186 = vmul.f32 %v90, %v90
    %v187 = vmul.f32 %v91, %v91
    %v188 = vmul.f32 %v92, %v92
    %v189 = vmul.f32 %v93, %v93
    %v190 = vmul.f32 %v94, %v94
    %v191 = vmul.f32 %v95, %v95
    %v192 = vmul.f32 %v96, %v96
    %v193 = vmul.f32 %v97, %v97
    %v194 = vmul.f32 %v98, %v98
    %v195 = vmul.f32 %v99, %v99
    %v196 = vmul.f32 %v100, %v100
    %v197 = vmul.f32 %v101, %v101
    %v198 = vadd.f32 %v166, %v182
    %v199 = vadd.f32 %v167, %v183
    %v200 = vadd.f32 %v168, %v184
    %v201 = vadd.f32 %v169, %v185
    %v202 = vadd.f32 %v170, %v186
    %v203 = vadd.f32 %v171, %v187
    %v204 = vadd.f32 %v172, %v188
    %v205 = vadd.f32 %v173, %v189
    %v206 = vadd.f32 %v174, %v190
    %v207 = vadd.f32 %v175, %v191
    %v208 = vadd.f32 %v176, %v192
    %v209 = vadd.f32 %v177, %v193
    %v210 = vadd.f32 %v178, %v194
    %v211 = vadd.f32 %v179, %v195
    %v212 = vadd.f32 %v180, %v196
    %v213 = vadd.f32 %v181, %v197
    %v214 = vmax.f32 %v198, 1e-16
    %v215 = vmax.f32 %v199, 1e-16
    %v216 = vmax.f32 %v200, 1e-16
    %v217 = vmax.f32 %v201, 1e-16
    %v218 = vmax.f32 %v202, 1e-16
    %v219 = vmax.f32 %v203, 1e-16
    %v220 = vmax.f32 %v204, 1e-16
    %v221 = vmax.f32 %v205, 1e-16
    %v222 = vmax.f32 %v206, 1e-16
    %v223 = vmax.f32 %v207, 1e-16
    %v224 = vmax.f32 %v208, 1e-16
    %v225 = vmax.f32 %v209, 1e-16
    %v226 = vmax.f32 %v210, 1e-16
    %v227 = vmax.f32 %v211, 1e-16
    %v228 = vmax.f32 %v212, 1e-16
    %v229 = vmax.f32 %v213, 1e-16
    %v230 = vlog2.pop %v150
    %v231 = vmul.f32 %v230, 0.6931472
    %v232 = vlog2.pop %v151
    %v233 = vmul.f32 %v232, 0.6931472
    %v234 = vlog2.pop %v152
    %v235 = vmul.f32 %v234, 0.6931472
    %v236 = vlog2.pop %v153
    %v237 = vmul.f32 %v236, 0.6931472
    %v238 = vlog2.pop %v154
    %v239 = vmul.f32 %v238, 0.6931472
    %v240 = vlog2.pop %v155
    %v241 = vmul.f32 %v240, 0.6931472
    %v242 = vlog2.pop %v156
    %v243 = vmul.f32 %v242, 0.6931472
    %v244 = vlog2.pop %v157
    %v245 = vmul.f32 %v244, 0.6931472
    %v246 = vlog2.pop %v158
    %v247 = vmul.f32 %v246, 0.6931472
    %v248 = vlog2.pop %v159
    %v249 = vmul.f32 %v248, 0.6931472
    %v250 = vlog2.pop %v160
    %v251 = vmul.f32 %v250, 0.6931472
    %v252 = vlog2.pop %v161
    %v253 = vmul.f32 %v252, 0.6931472
    %v254 = vlog2.pop %v162
    %v255 = vmul.f32 %v254, 0.6931472
    %v256 = vlog2.pop %v163
    %v257 = vmul.f32 %v256, 0.6931472
    %v258 = vlog2.pop %v164
    %v259 = vmul.f32 %v258, 0.6931472
    %v260 = vlog2.pop %v165
    %v261 = vmul.f32 %v260, 0.6931472
    %v262 = vlog2.pop %v214
    %v263 = vmul.f32 %v262, 0.6931472
    %v264 = vlog2.pop %v215
    %v265 = vmul.f32 %v264, 0.6931472
    %v266 = vlog2.pop %v216
    %v267 = vmul.f32 %v266, 0.6931472
    %v268 = vlog2.pop %v217
    %v269 = vmul.f32 %v268, 0.6931472
    %v270 = vlog2.pop %v218
    %v271 = vmul.f32 %v270, 0.6931472
    %v272 = vlog2.pop %v219
    %v273 = vmul.f32 %v272, 0.6931472
    %v274 = vlog2.pop %v220
    %v275 = vmul.f32 %v274, 0.6931472
    %v276 = vlog2.pop %v221
    %v277 = vmul.f32 %v276, 0.6931472
    %v278 = vlog2.pop %v222
    %v279 = vmul.f32 %v278, 0.6931472
    %v280 = vlog2.pop %v223
    %v281 = vmul.f32 %v280, 0.6931472
    %v282 = vlog2.pop %v224
    %v283 = vmul.f32 %v282, 0.6931472
    %v284 = vlog2.pop %v225
    %v285 = vmul.f32 %v284, 0.6931472
    %v286 = vlog2.pop %v226
    %v287 = vmul.f32 %v286, 0.6931472
    %v288 = vlog2.pop %v227
    %v289 = vmul.f32 %v288, 0.6931472
    %v290 = vlog2.pop %v228
    %v291 = vmul.f32 %v290, 0.6931472
    %v292 = vlog2.pop %v229
    %v293 = vmul.f32 %v292, 0.6931472
    %v294 = vmul.f32 %v231, 0.15
    %v295 = vmul.f32 %v233, 0.15
    %v296 = vmul.f32 %v235, 0.15
    %v297 = vmul.f32 %v237, 0.15
    %v298 = vmul.f32 %v239, 0.15
    %v299 = vmul.f32 %v241, 0.15
    %v300 = vmul.f32 %v243, 0.15
    %v301 = vmul.f32 %v245, 0.15
    %v302 = vmul.f32 %v247, 0.15
    %v303 = vmul.f32 %v249, 0.15
    %v304 = vmul.f32 %v251, 0.15
    %v305 = vmul.f32 %v253, 0.15
    %v306 = vmul.f32 %v255, 0.15
    %v307 = vmul.f32 %v257, 0.15
    %v308 = vmul.f32 %v259, 0.15
    %v309 = vmul.f32 %v261, 0.15
    %v310 = vmul.f32 %v294, 1.442695
    %v311 = vpow.pop %v310
    %v312 = vmul.f32 %v295, 1.442695
    %v313 = vpow.pop %v312
    %v314 = vmul.f32 %v296, 1.442695
    %v315 = vpow.pop %v314
    %v316 = vmul.f32 %v297, 1.442695
    %v317 = vpow.pop %v316
    %v318 = vmul.f32 %v298, 1.442695
    %v319 = vpow.pop %v318
    %v320 = vmul.f32 %v299, 1.442695
    %v321 = vpow.pop %v320
    %v322 = vmul.f32 %v300, 1.442695
    %v323 = vpow.pop %v322
    %v324 = vmul.f32 %v301, 1.442695
    %v325 = vpow.pop %v324
    %v326 = vmul.f32 %v302, 1.442695
    %v327 = vpow.pop %v326
    %v328 = vmul.f32 %v303, 1.442695
    %v329 = vpow.pop %v328
    %v330 = vmul.f32 %v304, 1.442695
    %v331 = vpow.pop %v330
    %v332 = vmul.f32 %v305, 1.442695
    %v333 = vpow.pop %v332
    %v334 = vmul.f32 %v306, 1.442695
    %v335 = vpow.pop %v334
    %v336 = vmul.f32 %v307, 1.442695
    %v337 = vpow.pop %v336
    %v338 = vmul.f32 %v308, 1.442695
    %v339 = vpow.pop %v338
    %v340 = vmul.f32 %v309, 1.442695
    %v341 = vpow.pop %v340
    %v342 = vmul.f32 %v263, 0.15
    %v343 = vmul.f32 %v265, 0.15
    %v344 = vmul.f32 %v267, 0.15
    %v345 = vmul.f32 %v269, 0.15
    %v346 = vmul.f32 %v271, 0.15
    %v347 = vmul.f32 %v273, 0.15
    %v348 = vmul.f32 %v275, 0.15
    %v349 = vmul.f32 %v277, 0.15
    %v350 = vmul.f32 %v279, 0.15
    %v351 = vmul.f32 %v281, 0.15
    %v352 = vmul.f32 %v283, 0.15
    %v353 = vmul.f32 %v285, 0.15
    %v354 = vmul.f32 %v287, 0.15
    %v355 = vmul.f32 %v289, 0.15
    %v356 = vmul.f32 %v291, 0.15
    %v357 = vmul.f32 %v293, 0.15
    %v358 = vmul.f32 %v342, 1.442695
    %v359 = vpow.pop %v358
    %v360 = vmul.f32 %v343, 1.442695
    %v361 = vpow.pop %v360
    %v362 = vmul.f32 %v344, 1.442695
    %v363 = vpow.pop %v362
    %v364 = vmul.f32 %v345, 1.442695
    %v365 = vpow.pop %v364
    %v366 = vmul.f32 %v346, 1.442695
    %v367 = vpow.pop %v366
    %v368 = vmul.f32 %v347, 1.442695
    %v369 = vpow.pop %v368
    %v370 = vmul.f32 %v348, 1.442695
    %v371 = vpow.pop %v370
    %v372 = vmul.f32 %v349, 1.442695
    %v373 = vpow.pop %v372
    %v374 = vmul.f32 %v350, 1.442695
    %v375 = vpow.pop %v374
    %v376 = vmul.f32 %v351, 1.442695
    %v377 = vpow.pop %v376
    %v378 = vmul.f32 %v352, 1.442695
    %v379 = vpow.pop %v378
    %v380 = vmul.f32 %v353, 1.442695
    %v381 = vpow.pop %v380
    %v382 = vmul.f32 %v354, 1.442695
    %v383 = vpow.pop %v382
    %v384 = vmul.f32 %v355, 1.442695
    %v385 = vpow.pop %v384
    %v386 = vmul.f32 %v356, 1.442695
    %v387 = vpow.pop %v386
    %v388 = vmul.f32 %v357, 1.442695
    %v389 = vpow.pop %v388
    %v390 = vmul.f32 %v231, -0.35
    %v391 = vmul.f32 %v233, -0.35
    %v392 = vmul.f32 %v235, -0.35
    %v393 = vmul.f32 %v237, -0.35
    %v394 = vmul.f32 %v239, -0.35
    %v395 = vmul.f32 %v241, -0.35
    %v396 = vmul.f32 %v243, -0.35
    %v397 = vmul.f32 %v245, -0.35
    %v398 = vmul.f32 %v247, -0.35
    %v399 = vmul.f32 %v249, -0.35
    %v400 = vmul.f32 %v251, -0.35
    %v401 = vmul.f32 %v253, -0.35
    %v402 = vmul.f32 %v255, -0.35
    %v403 = vmul.f32 %v257, -0.35
    %v404 = vmul.f32 %v259, -0.35
    %v405 = vmul.f32 %v261, -0.35
    %v406 = vmul.f32 %v390, 1.442695
    %v407 = vpow.pop %v406
    %v408 = vmul.f32 %v391, 1.442695
    %v409 = vpow.pop %v408
    %v410 = vmul.f32 %v392, 1.442695
    %v411 = vpow.pop %v410
    %v412 = vmul.f32 %v393, 1.442695
    %v413 = vpow.pop %v412
    %v414 = vmul.f32 %v394, 1.442695
    %v415 = vpow.pop %v414
    %v416 = vmul.f32 %v395, 1.442695
    %v417 = vpow.pop %v416
    %v418 = vmul.f32 %v396, 1.442695
    %v419 = vpow.pop %v418
    %v420 = vmul.f32 %v397, 1.442695
    %v421 = vpow.pop %v420
    %v422 = vmul.f32 %v398, 1.442695
    %v423 = vpow.pop %v422
    %v424 = vmul.f32 %v399, 1.442695
    %v425 = vpow.pop %v424
    %v426 = vmul.f32 %v400, 1.442695
    %v427 = vpow.pop %v426
    %v428 = vmul.f32 %v401, 1.442695
    %v429 = vpow.pop %v428
    %v430 = vmul.f32 %v402, 1.442695
    %v431 = vpow.pop %v430
    %v432 = vmul.f32 %v403, 1.442695
    %v433 = vpow.pop %v432
    %v434 = vmul.f32 %v404, 1.442695
    %v435 = vpow.pop %v434
    %v436 = vmul.f32 %v405, 1.442695
    %v437 = vpow.pop %v436
    %v438 = vmul.f32 %v263, -0.35
    %v439 = vmul.f32 %v265, -0.35
    %v440 = vmul.f32 %v267, -0.35
    %v441 = vmul.f32 %v269, -0.35
    %v442 = vmul.f32 %v271, -0.35
    %v443 = vmul.f32 %v273, -0.35
    %v444 = vmul.f32 %v275, -0.35
    %v445 = vmul.f32 %v277, -0.35
    %v446 = vmul.f32 %v279, -0.35
    %v447 = vmul.f32 %v281, -0.35
    %v448 = vmul.f32 %v283, -0.35
    %v449 = vmul.f32 %v285, -0.35
    %v450 = vmul.f32 %v287, -0.35
    %v451 = vmul.f32 %v289, -0.35
    %v452 = vmul.f32 %v291, -0.35
    %v453 = vmul.f32 %v293, -0.35
    %v454 = vmul.f32 %v438, 1.442695
    %v455 = vpow.pop %v454
    %v456 = vmul.f32 %v439, 1.442695
    %v457 = vpow.pop %v456
    %v458 = vmul.f32 %v440, 1.442695
    %v459 = vpow.pop %v458
    %v460 = vmul.f32 %v441, 1.442695
    %v461 = vpow.pop %v460
    %v462 = vmul.f32 %v442, 1.442695
    %v463 = vpow.pop %v462
    %v464 = vmul.f32 %v443, 1.442695
    %v465 = vpow.pop %v464
    %v466 = vmul.f32 %v444, 1.442695
    %v467 = vpow.pop %v466
    %v468 = vmul.f32 %v445, 1.442695
    %v469 = vpow.pop %v468
    %v470 = vmul.f32 %v446, 1.442695
    %v471 = vpow.pop %v470
    %v472 = vmul.f32 %v447, 1.442695
    %v473 = vpow.pop %v472
    %v474 = vmul.f32 %v448, 1.442695
    %v475 = vpow.pop %v474
    %v476 = vmul.f32 %v449, 1.442695
    %v477 = vpow.pop %v476
    %v478 = vmul.f32 %v450, 1.442695
    %v479 = vpow.pop %v478
    %v480 = vmul.f32 %v451, 1.442695
    %v481 = vpow.pop %v480
    %v482 = vmul.f32 %v452, 1.442695
    %v483 = vpow.pop %v482
    %v484 = vmul.f32 %v453, 1.442695
    %v485 = vpow.pop %v484
    %v486 = vsub.f32 %v359, %v311
    %v487 = vsub.f32 %v361, %v313
    %v488 = vsub.f32 %v363, %v315
    %v489 = vsub.f32 %v365, %v317
    %v490 = vsub.f32 %v367, %v319
    %v491 = vsub.f32 %v369, %v321
    %v492 = vsub.f32 %v371, %v323
    %v493 = vsub.f32 %v373, %v325
    %v494 = vsub.f32 %v375, %v327
    %v495 = vsub.f32 %v377, %v329
    %v496 = vsub.f32 %v379, %v331
    %v497 = vsub.f32 %v381, %v333
    %v498 = vsub.f32 %v383, %v335
    %v499 = vsub.f32 %v385, %v337
    %v500 = vsub.f32 %v387, %v339
    %v501 = vsub.f32 %v389, %v341
    %v502 = vmul.f32 %v455, %v69
    %v503 = vmul.f32 %v457, %v70
    %v504 = vmul.f32 %v459, %v71
    %v505 = vmul.f32 %v461, %v72
    %v506 = vmul.f32 %v463, %v73
    %v507 = vmul.f32 %v465, %v74
    %v508 = vmul.f32 %v467, %v75
    %v509 = vmul.f32 %v469, %v76
    %v510 = vmul.f32 %v471, %v77
    %v511 = vmul.f32 %v473, %v78
    %v512 = vmul.f32 %v475, %v79
    %v513 = vmul.f32 %v477, %v80
    %v514 = vmul.f32 %v479, %v81
    %v515 = vmul.f32 %v481, %v82
    %v516 = vmul.f32 %v483, %v83
    %v517 = vmul.f32 %v485, %v84
    %v518 = vmul.f32 %v407, %v35
    %v519 = vmul.f32 %v409, %v36
    %v520 = vmul.f32 %v411, %v37
    %v521 = vmul.f32 %v413, %v38
    %v522 = vmul.f32 %v415, %v39
    %v523 = vmul.f32 %v417, %v40
    %v524 = vmul.f32 %v419, %v41
    %v525 = vmul.f32 %v421, %v42
    %v526 = vmul.f32 %v423, %v43
    %v527 = vmul.f32 %v425, %v44
    %v528 = vmul.f32 %v427, %v45
    %v529 = vmul.f32 %v429, %v46
    %v530 = vmul.f32 %v431, %v47
    %v531 = vmul.f32 %v433, %v48
    %v532 = vmul.f32 %v435, %v49
    %v533 = vmul.f32 %v437, %v50
    %v534 = vsub.f32 %v502, %v518
    %v535 = vsub.f32 %v503, %v519
    %v536 = vsub.f32 %v504, %v520
    %v537 = vsub.f32 %v505, %v521
    %v538 = vsub.f32 %v506, %v522
    %v539 = vsub.f32 %v507, %v523
    %v540 = vsub.f32 %v508, %v524
    %v541 = vsub.f32 %v509, %v525
    %v542 = vsub.f32 %v510, %v526
    %v543 = vsub.f32 %v511, %v527
    %v544 = vsub.f32 %v512, %v528
    %v545 = vsub.f32 %v513, %v529
    %v546 = vsub.f32 %v514, %v530
    %v547 = vsub.f32 %v515, %v531
    %v548 = vsub.f32 %v516, %v532
    %v549 = vsub.f32 %v517, %v533
    %v550 = vmul.f32 %v455, %v86
    %v551 = vmul.f32 %v457, %v87
    %v552 = vmul.f32 %v459, %v88
    %v553 = vmul.f32 %v461, %v89
    %v554 = vmul.f32 %v463, %v90
    %v555 = vmul.f32 %v465, %v91
    %v556 = vmul.f32 %v467, %v92
    %v557 = vmul.f32 %v469, %v93
    %v558 = vmul.f32 %v471, %v94
    %v559 = vmul.f32 %v473, %v95
    %v560 = vmul.f32 %v475, %v96
    %v561 = vmul.f32 %v477, %v97
    %v562 = vmul.f32 %v479, %v98
    %v563 = vmul.f32 %v481, %v99
    %v564 = vmul.f32 %v483, %v100
    %v565 = vmul.f32 %v485, %v101
    %v566 = vmul.f32 %v407, %v52
    %v567 = vmul.f32 %v409, %v53
    %v568 = vmul.f32 %v411, %v54
    %v569 = vmul.f32 %v413, %v55
    %v570 = vmul.f32 %v415, %v56
    %v571 = vmul.f32 %v417, %v57
    %v572 = vmul.f32 %v419, %v58
    %v573 = vmul.f32 %v421, %v59
    %v574 = vmul.f32 %v423, %v60
    %v575 = vmul.f32 %v425, %v61
    %v576 = vmul.f32 %v427, %v62
    %v577 = vmul.f32 %v429, %v63
    %v578 = vmul.f32 %v431, %v64
    %v579 = vmul.f32 %v433, %v65
    %v580 = vmul.f32 %v435, %v66
    %v581 = vmul.f32 %v437, %v67
    %v582 = vsub.f32 %v550, %v566
    %v583 = vsub.f32 %v551, %v567
    %v584 = vsub.f32 %v552, %v568
    %v585 = vsub.f32 %v553, %v569
    %v586 = vsub.f32 %v554, %v570
    %v587 = vsub.f32 %v555, %v571
    %v588 = vsub.f32 %v556, %v572
    %v589 = vsub.f32 %v557, %v573
    %v590 = vsub.f32 %v558, %v574
    %v591 = vsub.f32 %v559, %v575
    %v592 = vsub.f32 %v560, %v576
    %v593 = vsub.f32 %v561, %v577
    %v594 = vsub.f32 %v562, %v578
    %v595 = vsub.f32 %v563, %v579
    %v596 = vsub.f32 %v564, %v580
    %v597 = vsub.f32 %v565, %v581
    %v598 = vmul.f32 %v486, %v486
    %v599 = vmul.f32 %v487, %v487
    %v600 = vmul.f32 %v488, %v488
    %v601 = vmul.f32 %v489, %v489
    %v602 = vmul.f32 %v490, %v490
    %v603 = vmul.f32 %v491, %v491
    %v604 = vmul.f32 %v492, %v492
    %v605 = vmul.f32 %v493, %v493
    %v606 = vmul.f32 %v494, %v494
    %v607 = vmul.f32 %v495, %v495
    %v608 = vmul.f32 %v496, %v496
    %v609 = vmul.f32 %v497, %v497
    %v610 = vmul.f32 %v498, %v498
    %v611 = vmul.f32 %v499, %v499
    %v612 = vmul.f32 %v500, %v500
    %v613 = vmul.f32 %v501, %v501
    %v614 = vmul.f32 %v598, 0.7
    %v615 = vmul.f32 %v599, 0.7
    %v616 = vmul.f32 %v600, 0.7
    %v617 = vmul.f32 %v601, 0.7
    %v618 = vmul.f32 %v602, 0.7
    %v619 = vmul.f32 %v603, 0.7
    %v620 = vmul.f32 %v604, 0.7
    %v621 = vmul.f32 %v605, 0.7
    %v622 = vmul.f32 %v606, 0.7
    %v623 = vmul.f32 %v607, 0.7
    %v624 = vmul.f32 %v608, 0.7
    %v625 = vmul.f32 %v609, 0.7
    %v626 = vmul.f32 %v610, 0.7
    %v627 = vmul.f32 %v611, 0.7
    %v628 = vmul.f32 %v612, 0.7
    %v629 = vmul.f32 %v613, 0.7
    %v630 = vmul.f32 %v534, %v534
    %v631 = vmul.f32 %v535, %v535
    %v632 = vmul.f32 %v536, %v536
    %v633 = vmul.f32 %v537, %v537
    %v634 = vmul.f32 %v538, %v538
    %v635 = vmul.f32 %v539, %v539
    %v636 = vmul.f32 %v540, %v540
    %v637 = vmul.f32 %v541, %v541
    %v638 = vmul.f32 %v542, %v542
    %v639 = vmul.f32 %v543, %v543
    %v640 = vmul.f32 %v544, %v544
    %v641 = vmul.f32 %v545, %v545
    %v642 = vmul.f32 %v546, %v546
    %v643 = vmul.f32 %v547, %v547
    %v644 = vmul.f32 %v548, %v548
    %v645 = vmul.f32 %v549, %v549
    %v646 = vmul.f32 %v582, %v582
    %v647 = vmul.f32 %v583, %v583
    %v648 = vmul.f32 %v584, %v584
    %v649 = vmul.f32 %v585, %v585
    %v650 = vmul.f32 %v586, %v586
    %v651 = vmul.f32 %v587, %v587
    %v652 = vmul.f32 %v588, %v588
    %v653 = vmul.f32 %v589, %v589
    %v654 = vmul.f32 %v590, %v590
    %v655 = vmul.f32 %v591, %v591
    %v656 = vmul.f32 %v592, %v592
    %v657 = vmul.f32 %v593, %v593
    %v658 = vmul.f32 %v594, %v594
    %v659 = vmul.f32 %v595, %v595
    %v660 = vmul.f32 %v596, %v596
    %v661 = vmul.f32 %v597, %v597
    %v662 = vadd.f32 %v630, %v646
    %v663 = vadd.f32 %v631, %v647
    %v664 = vadd.f32 %v632, %v648
    %v665 = vadd.f32 %v633, %v649
    %v666 = vadd.f32 %v634, %v650
    %v667 = vadd.f32 %v635, %v651
    %v668 = vadd.f32 %v636, %v652
    %v669 = vadd.f32 %v637, %v653
    %v670 = vadd.f32 %v638, %v654
    %v671 = vadd.f32 %v639, %v655
    %v672 = vadd.f32 %v640, %v656
    %v673 = vadd.f32 %v641, %v657
    %v674 = vadd.f32 %v642, %v658
    %v675 = vadd.f32 %v643, %v659
    %v676 = vadd.f32 %v644, %v660
    %v677 = vadd.f32 %v645, %v661
    %v678 = vmul.f32 %v662, 0.3
    %v679 = vmul.f32 %v663, 0.3
    %v680 = vmul.f32 %v664, 0.3
    %v681 = vmul.f32 %v665, 0.3
    %v682 = vmul.f32 %v666, 0.3
    %v683 = vmul.f32 %v667, 0.3
    %v684 = vmul.f32 %v668, 0.3
    %v685 = vmul.f32 %v669, 0.3
    %v686 = vmul.f32 %v670, 0.3
    %v687 = vmul.f32 %v671, 0.3
    %v688 = vmul.f32 %v672, 0.3
    %v689 = vmul.f32 %v673, 0.3
    %v690 = vmul.f32 %v674, 0.3
    %v691 = vmul.f32 %v675, 0.3
    %v692 = vmul.f32 %v676, 0.3
    %v693 = vmul.f32 %v677, 0.3
    %v694 = vadd.f32 %v614, %v678
    %v695 = vadd.f32 %v615, %v679
    %v696 = vadd.f32 %v616, %v680
    %v697 = vadd.f32 %v617, %v681
    %v698 = vadd.f32 %v618, %v682
    %v699 = vadd.f32 %v619, %v683
    %v700 = vadd.f32 %v620, %v684
    %v701 = vadd.f32 %v621, %v685
    %v702 = vadd.f32 %v622, %v686
    %v703 = vadd.f32 %v623, %v687
    %v704 = vadd.f32 %v624, %v688
    %v705 = vadd.f32 %v625, %v689
    %v706 = vadd.f32 %v626, %v690
    %v707 = vadd.f32 %v627, %v691
    %v708 = vadd.f32 %v628, %v692
    %v709 = vadd.f32 %v629, %v693
    %v710 = vld [vmem:[#allocation5] sm:$0x1]
    %v711 = vadd.f32 %v694, %v695
    %v712 = vadd.f32 %v711, %v696
    %v713 = vadd.f32 %v712, %v697
    %v714 = vadd.f32 %v713, %v698
    %v715 = vadd.f32 %v714, %v699
    %v716 = vadd.f32 %v715, %v700
    %v717 = vadd.f32 %v716, %v701
    %v718 = vadd.f32 %v717, %v702
    %v719 = vadd.f32 %v718, %v703
    %v720 = vadd.f32 %v719, %v704
    %v721 = vadd.f32 %v720, %v705
    %v722 = vadd.f32 %v721, %v706
    %v723 = vadd.f32 %v722, %v707
    %v724 = vadd.f32 %v723, %v708
    %v725 = vadd.f32 %v724, %v709
    %726 = vadd.xlane.f32.xlu0 %v725
    %v727 = vpop.xlane.xlu0 %726
    %v728 = vrot.slane %v727, 4
    %v729 = vadd.f32 %v727, %v728
    %v730 = vrot.slane %v729, 2
    %v731 = vadd.f32 %v729, %v730
    %v732 = vrot.slane %v731, 1
    %v733 = vadd.f32 %v731, %v732
    %s734 = vtos %v733
    %v735 = vstv %s734
    %v736 = vadd.f32 %v710, %v735
    %vm737 = vcmask 0
    %738 = vst.msk [vmem:[#allocation5] sm:$0x1] %vm737, %v736
    // Predicated region
    $region14: #{tpu_custom_call.1} parent=1 // pred_check
      _
    $region15: #{tpu_custom_call.1} parent=1 // pred_check_branch
      %740 = sbr.rel (0) target = $region17
    $region16: #{tpu_custom_call.1} parent=1 // pred_region
      %s742 = ssub.s32 16, 16
      %743 = vsyncadd [#allocation4], %s742
      %s745 = sshll.u32 [#allocation5], 4
      %s746 = int_to_ptr.vmem [resolvable:$true] %s745
      %748 = dma.vmem_to_hbm [thread:$0]  %s746, 16, %s1, [#allocation4]
    $region17: #{tpu_custom_call.1} parent=1 // pred_fallthru
      _
    // Predicated region
    $region18: #{tpu_custom_call.1} parent=1 // pred_check
      _
    $region19: #{tpu_custom_call.1} parent=1 // pred_check_branch
      %750 = sbr.rel (0) target = $region21
    $region20: #{tpu_custom_call.1} parent=1 // pred_region
      %751 = dma.done [#allocation4], 16
    $region21: #{tpu_custom_call.1} parent=1 // pred_fallthru
      _
    %752 = vsyncpa [#allocation3], 1
    %753 = vsyncpa [#allocation4], 1

</llo_original>
